<compile_context>
chip_gen: v6e
topology: v6e:2x2x1
jax: 0.10.0
libtpu: 0.0.40
codegen_flags: <defaults>
</compile_context>

<pallas_src>
import math
from functools import partial

import jax
import jax.numpy as jnp
import numpy as np
from jax.experimental import pallas as pl
from jax.experimental.pallas import tpu as pltpu


def _self_similarity_kernel(inv_temp, x_ref, out_ref):
    """One grid step: TB batch elements, full (S, S) similarity softmax.

    x_ref  : (TB, S, D) f32
    out_ref: (TB, S, S) f32
    """
    x = x_ref[...]
    xx = x * x
    # Two independent lane-axis reductions instead of reduce + transpose:
    # avoids an XLU relayout of the norm vector per grid step.
    sq_col = jnp.sum(xx, axis=-1, keepdims=True)          # (TB, S, 1)  S on sublanes
    sq_row = jnp.sum(xx, axis=-1)[:, None, :]             # (TB, 1, S)  S on lanes

    # Batched Gram matrix on the MXU; contraction over D for both operands,
    # so no explicit transpose is materialized.
    gram = jnp.einsum("bsd,btd->bst", x, x,
                      preferred_element_type=jnp.float32)  # (TB, S, S)

    d2 = (sq_col + sq_row) - 2.0 * gram                    # pairwise squared distances
    logits = d2 * (-inv_temp)

    # numerically-stable softmax over the last (lane) axis, all f32
    m = jnp.max(logits, axis=-1, keepdims=True)
    p = jnp.exp(logits - m)
    denom = jnp.sum(p, axis=-1, keepdims=True)
    out_ref[...] = p / denom


def _pick_block_batch(n, s):
    """Fold batch so each grid step has >= 128 rows of MXU work where possible,
    while keeping >= 2 grid steps so both v7x TensorCores get work."""
    best = n
    for d in range(1, n + 1):
        if n % d == 0 and d * s >= 128:
            best = d
            break
    if best == n and n > 1:
        for d in range(n // 2, 0, -1):
            if n % d == 0:
                best = d
                break
    return best


def self_similarity_pallas(x, temperature=13.544):
    """Pallas TPU implementation of SelfSimilarity.forward.

    x: (N, S, D) float32  ->  (N, 1, S, S) float32
    """
    x = jnp.asarray(x, jnp.float32)
    n, s, d = x.shape
    tb = _pick_block_batch(n, s)
    grid = (n // tb,)

    out = pl.pallas_call(
        partial(_self_similarity_kernel, float(1.0 / temperature)),
        out_shape=jax.ShapeDtypeStruct((n, s, s), jnp.float32),
        grid=grid,
        in_specs=[pl.BlockSpec((tb, s, d), lambda b: (b, 0, 0))],
        out_specs=pl.BlockSpec((tb, s, s), lambda b: (b, 0, 0)),
        compiler_params=pltpu.CompilerParams(
            dimension_semantics=("parallel",)),
    )(x)

    # kernel writes a lane-dense (N, S, S) slab; add the singleton head dim
    # with a free wrapper-side reshape instead of a size-1 interior block dim.
    return out[:, None, :, :]


def self_similarity_ref(x, temperature=13.544):
    """Pure-JAX reference mirroring the PyTorch module."""
    sq = jnp.sum(x ** 2, axis=-1, keepdims=True)                    # (N, S, 1)
    out = sq + jnp.swapaxes(sq, 1, 2) - 2.0 * jnp.einsum("nsd,ntd->nst", x, x)
    out = out[:, None, :, :]
    return jax.nn.softmax(-out / temperature, axis=-1)


if __name__ == "__main__":
    key = jax.random.PRNGKey(0)
    k1, k2 = jax.random.split(key)

    # primary shape: lane-dense (S = 128) similarity maps, batch of 2
    x1 = jax.random.normal(k1, (2, 128, 32), jnp.float32)
    out1 = jax.block_until_ready(self_similarity_pallas(x1))
    ref1 = jax.block_until_ready(self_similarity_ref(x1))
    np.testing.assert_allclose(np.asarray(out1), np.asarray(ref1),
                               rtol=2e-5, atol=2e-5)

    # small-sequence shape: exercises batch folding (TB > 1) per grid step
    x2 = jax.random.normal(k2, (4, 8, 16), jnp.float32)
    out2 = jax.block_until_ready(self_similarity_pallas(x2))
    ref2 = jax.block_until_ready(self_similarity_ref(x2))
    np.testing.assert_allclose(np.asarray(out2), np.asarray(ref2),
                               rtol=2e-5, atol=2e-5)

    print("KERNEL_OK")
</pallas_src>

<mosaic_0001>
module attributes {stable_mosaic.version = 11 : i64} {
  func.func @_self_similarity_kernel(%arg0: i32, %arg1: memref<1x128x32xf32, #tpu.memory_space<vmem>>, %arg2: memref<1x128x128xf32, #tpu.memory_space<vmem>>) attributes {dimension_semantics = [#tpu.dimension_semantics<parallel>], iteration_bounds = array<i64: 2>, scalar_prefetch = 0 : i64, scratch_operands = 0 : i64, tpu.core_type = #tpu.core_type<tc>, window_params = [{transform_indices = @transform_0, window_bounds = array<i64: 1, 128, 32>}, {transform_indices = @transform_1, window_bounds = array<i64: 1, 128, 128>}]} {
    %c0 = arith.constant 0 : index
    %c0_0 = arith.constant 0 : index
    %c0_1 = arith.constant 0 : index
    %0 = vector.load %arg1[%c0, %c0_0, %c0_1] : memref<1x128x32xf32, #tpu.memory_space<vmem>>, vector<1x128x32xf32>
    %1 = arith.mulf %0, %0 : vector<1x128x32xf32>
    %cst = arith.constant dense<0.000000e+00> : vector<1x128xf32>
    %2 = vector.multi_reduction <add>, %1, %cst [2] : vector<1x128x32xf32> to vector<1x128xf32>
    %3 = vector.shape_cast %2 : vector<1x128xf32> to vector<1x128x1xf32>
    %cst_2 = arith.constant dense<0.000000e+00> : vector<1x128xf32>
    %4 = vector.multi_reduction <add>, %1, %cst_2 [2] : vector<1x128x32xf32> to vector<1x128xf32>
    %5 = vector.shape_cast %4 : vector<1x128xf32> to vector<1x1x128xf32>
    "tpu.trace_start"() <{level = 10 : i32, message = "bsd,btd->bst"}> : () -> ()
    %cst_3 = arith.constant dense<0.000000e+00> : vector<1x128x128xf32>
    %6 = tpu.matmul %0, %0, %cst_3 {dimension_numbers = #tpu.dot_dimension_numbers<[2], [2], [1], [1], [0, 0, 0, 1, 1, 1], [0], [0]>} : vector<1x128x32xf32>, vector<1x128x32xf32>, vector<1x128x128xf32> -> vector<1x128x128xf32>
    "tpu.trace_stop"() : () -> ()
    %7 = vector.broadcast %3 : vector<1x128x1xf32> to vector<1x128x128xf32>
    %8 = vector.broadcast %5 : vector<1x1x128xf32> to vector<1x128x128xf32>
    %9 = arith.addf %7, %8 : vector<1x128x128xf32>
    %cst_4 = arith.constant 2.000000e+00 : f32
    %10 = vector.broadcast %cst_4 : f32 to vector<1x128x128xf32>
    %11 = arith.mulf %10, %6 : vector<1x128x128xf32>
    %12 = arith.subf %9, %11 : vector<1x128x128xf32>
    %cst_5 = arith.constant -0.0738334283 : f32
    %13 = vector.broadcast %cst_5 : f32 to vector<1x128x128xf32>
    %14 = arith.mulf %12, %13 : vector<1x128x128xf32>
    %cst_6 = arith.constant dense<0xFF800000> : vector<1x128xf32>
    %15 = vector.multi_reduction <maximumf>, %14, %cst_6 [2] : vector<1x128x128xf32> to vector<1x128xf32>
    %16 = vector.shape_cast %15 : vector<1x128xf32> to vector<1x128x1xf32>
    %17 = vector.broadcast %16 : vector<1x128x1xf32> to vector<1x128x128xf32>
    %18 = arith.subf %14, %17 : vector<1x128x128xf32>
    %19 = math.exp %18 : vector<1x128x128xf32>
    %cst_7 = arith.constant dense<0.000000e+00> : vector<1x128xf32>
    %20 = vector.multi_reduction <add>, %19, %cst_7 [2] : vector<1x128x128xf32> to vector<1x128xf32>
    %21 = vector.shape_cast %20 : vector<1x128xf32> to vector<1x128x1xf32>
    %22 = vector.broadcast %21 : vector<1x128x1xf32> to vector<1x128x128xf32>
    %23 = arith.divf %19, %22 : vector<1x128x128xf32>
    %c0_8 = arith.constant 0 : index
    %c0_9 = arith.constant 0 : index
    %c0_10 = arith.constant 0 : index
    %24 = vector.load %arg2[%c0_8, %c0_9, %c0_10] : memref<1x128x128xf32, #tpu.memory_space<vmem>>, vector<1x128x128xf32>
    tpu.vector_store %arg2[%c0_8, %c0_9, %c0_10], %23 {strides = array<i32>} : memref<1x128x128xf32, #tpu.memory_space<vmem>>, vector<1x128x128xf32>,
    return
  }
  func.func @transform_0(%arg0: i32) -> (i32, i32, i32) {
    %c0_i32 = arith.constant 0 : i32
    %c0_i32_0 = arith.constant 0 : i32
    %c0_i32_1 = arith.constant 0 : i32
    return %arg0, %c0_i32, %c0_i32_0 : i32, i32, i32
  }
  func.func @transform_1(%arg0: i32) -> (i32, i32, i32) {
    %c0_i32 = arith.constant 0 : i32
    %c0_i32_0 = arith.constant 0 : i32
    %c0_i32_1 = arith.constant 0 : i32
    return %arg0, %c0_i32, %c0_i32_0 : i32, i32, i32
  }
}

</mosaic_0001>

<llo_original>
// kernel: tpu_custom_call.1
$region0: #{tpu_custom_call.1}
  #allocation0 [shape = 'u32[]', space=smem, size = 0x4, offset = 0x4, fixed_abs, tag = 'smem constant byte address 0x4 - core index']
  #allocation1 [shape = 'u32[144,128]{1,0:T(1,128)}', space=vmem, size = 0x12000, scoped, tag = 'internal scratch']
  %s0 = inlined_call_operand.vmem [shape: f32[2,128,32], index: 0, kind: input, shape index: {}]
  %s1 = inlined_call_operand.hbm [shape: f32[2,128,128], index: 1, kind: output, shape index: {}]
  %s2 = sld [smem:[#allocation0]]
  $region37: #{tpu_custom_call.1} parent=0
    _
  %s4 = ssub.s32 1, %s2
  %s5 = scalar_select 0, %s4, %s2
  $region1: #{tpu_custom_call.1} parent=0
    #allocation2 [shape = 'u8[131072]{0}', space=vmem, size = 0x20000, scoped, tag = 'output window, operand 0']
    #allocation3 [shape = 's32[2]{0}', space=sflag, size = 0x8, scoped, tag = 'scoped memory for tpu_custom_call.1']
    %6 = vsyncpa [#allocation3], 0
    %s7 = scalar_lea.sflag [#allocation3], 1
    %8 = vsyncpa %s7, 0
    loop: start=0, step=1, limit=4
    $region2: #{tpu_custom_call.1} parent=1 // loop_pre_header
      _
    $region3: #{tpu_custom_call.1} parent=1 // loop_header
      %s10 = sphi 0, %s14
      %p11 = scmp.ge.s32.totalorder %s10, 4
      %s20 = sphi 0, %s22
      %s23 = sphi 0, %s20
      %s24 = sphi 0, %s23
      %s40 = sphi 0, %s24
      %s46 = sphi 0, %s48
      %s49 = sphi 0, %s46
      %s50 = sphi 0, %s49
      %s66 = sphi 0, %s50
    $region4: #{tpu_custom_call.1} parent=1 // loop_header_branch
      %13 = sbr.rel (%p11) target = $region8
    $region5: #{tpu_custom_call.1} parent=1 // loop_body
      %s15 = ssub.s32 %s10, 1
      %s16 = ssub.s32 %s10, 2
      %s17 = sadd.s32 %s10, 1
      %s18 = ssub.s32 %s10, %s17
      %p19 = scmp.eq.s32.totalorder %s18, 0
      %s21 = sadd.s32 %s20, 1
      %s22 = scalar_select %p19, %s20, %s21
      %p25 = pneg %p19
      %p26 = scmp.eq.s32.totalorder %s10, 1
      %p27 = por %p25, %p26
      %p28 = scmp.ne.s32.totalorder %s20, %s23
      %p29 = scmp.eq.s32.totalorder %s10, 0
      %p30 = por %p28, %p29
      %p31 = scmp.ne.s32.totalorder %s20, %s23
      %p32 = scmp.eq.s32.totalorder %s15, 1
      %p33 = por %p31, %p32
      %p34 = scmp.ne.s32.totalorder %s23, %s24
      %p35 = scmp.eq.s32.totalorder %s15, 0
      %p36 = por %p34, %p35
      %p37 = scmp.ne.s32.totalorder %s23, %s24
      %p38 = scmp.eq.s32.totalorder %s16, 1
      %p39 = por %p37, %p38
      %p41 = scmp.ne.s32.totalorder %s24, %s40
      %p42 = scmp.eq.s32.totalorder %s16, 0
      %p43 = por %p41, %p42
      %s44 = ssub.s32 %s10, %s17
      %p45 = scmp.eq.s32.totalorder %s44, 0
      %s47 = sadd.s32 %s46, 1
      %s48 = scalar_select %p45, %s46, %s47
      %p51 = pneg %p45
      %p52 = scmp.eq.s32.totalorder %s10, 1
      %p53 = por %p51, %p52
      %p54 = scmp.ne.s32.totalorder %s46, %s49
      %p55 = scmp.eq.s32.totalorder %s10, 0
      %p56 = por %p54, %p55
      %p57 = scmp.ne.s32.totalorder %s46, %s49
      %p58 = scmp.eq.s32.totalorder %s15, 1
      %p59 = por %p57, %p58
      %p60 = scmp.ne.s32.totalorder %s49, %s50
      %p61 = scmp.eq.s32.totalorder %s15, 0
      %p62 = por %p60, %p61
      %p63 = scmp.ne.s32.totalorder %s49, %s50
      %p64 = scmp.eq.s32.totalorder %s16, 1
      %p65 = por %p63, %p64
      %p67 = scmp.ne.s32.totalorder %s50, %s66
      %p68 = scmp.eq.s32.totalorder %s16, 0
      %p69 = por %p67, %p68
      %p70 = scmp.le.s32.totalorder 1, %s10
      %p71 = scmp.lt.s32.totalorder %s10, 3
      %p72 = pnand %p70, %p71
      %p73 = pneg %p72
      // Predicated region
      $region9: #{tpu_custom_call.1} parent=5 // pred_check
        _
      $region10: #{tpu_custom_call.1} parent=5 // pred_check_branch
        %75 = sbr.rel (%p72) target = $region12
      $region11: #{tpu_custom_call.1} parent=5 // pred_region
        %s76 = ssub.s32 %s10, 1
      $region12: #{tpu_custom_call.1} parent=5 // pred_fallthru
        _
      %p77 = scmp.lt.s32.totalorder %s10, 2
      // Predicated region
      $region13: #{tpu_custom_call.1} parent=5 // pred_check
        %p78 = pneg %p77
      $region14: #{tpu_custom_call.1} parent=5 // pred_check_branch
        %80 = sbr.rel (%p78) target = $region16
      $region15: #{tpu_custom_call.1} parent=5 // pred_region
        // Predicated region
        $region17: #{tpu_custom_call.1} parent=15 // pred_check
          %p81 = pneg %p30
        $region18: #{tpu_custom_call.1} parent=15 // pred_check_branch
          %83 = sbr.rel (%p81) target = $region20
        $region19: #{tpu_custom_call.1} parent=15 // pred_region
          %p84 = scmp.lt.s32.totalorder %s10, 1
          %s85 = scalar_select %p84, %s10, 1
          %s86 = smul.addr %s85, 16
          %s87 = smul.addr %s86, 8
          %s88 = scalar_lea.vmem %s0, %s87
        $region20: #{tpu_custom_call.1} parent=15 // pred_fallthru
          _
      $region16: #{tpu_custom_call.1} parent=5 // pred_fallthru
        _
      %p89 = scmp.le.s32.totalorder 1, %s10
      %p90 = scmp.lt.s32.totalorder %s10, 3
      %p91 = pnand %p89, %p90
      %p92 = pneg %p91
      // Predicated region
      $region21: #{tpu_custom_call.1} parent=5 // pred_check
        _
      $region22: #{tpu_custom_call.1} parent=5 // pred_check_branch
        %94 = sbr.rel (%p91) target = $region24
      $region23: #{tpu_custom_call.1} parent=5 // pred_region
        %s95 = ssub.s32 %s10, 1
        %p96 = scmp.lt.s32.totalorder %s15, 1
        %s97 = scalar_select %p96, %s15, 1
        %s98 = smul.addr %s97, 16
        %s99 = smul.addr %s98, 8
        %s100 = scalar_lea.vmem %s0, %s99
        %p101 = pneg %p36
        %p102 = pneg %p33
        %p103 = pneg %p62
        %p104 = pneg %p59
        %s105 = sand.u32 %s49, 1
        %s106 = scalar_lea.sflag [#allocation3], %s105
        %s107 = sand.u32 %s49, 1
        %s108 = smul.addr %s107, 128
        %s109 = scalar_lea.vmem [#allocation2], %s108
        %p110 = scmp.lt.s32.totalorder %s15, 1
        %s111 = scalar_select %p110, %s15, 1
        %s112 = smul.addr %s111, 16
        %s113 = smul.addr %s112, 8
        %s114 = scalar_lea.vmem %s0, %s113
        %v115 = vld [vmem:[%s114] sm:$0xff]
        %v116 = vld [vmem:[%s114 + $0x8] sm:$0xff]
        %v117 = vld [vmem:[%s114 + $0x10] sm:$0xff]
        %v118 = vld [vmem:[%s114 + $0x18] sm:$0xff]
        %v119 = vld [vmem:[%s114 + $0x20] sm:$0xff]
        %v120 = vld [vmem:[%s114 + $0x28] sm:$0xff]
        %v121 = vld [vmem:[%s114 + $0x30] sm:$0xff]
        %v122 = vld [vmem:[%s114 + $0x38] sm:$0xff]
        %v123 = vld [vmem:[%s114 + $0x40] sm:$0xff]
        %v124 = vld [vmem:[%s114 + $0x48] sm:$0xff]
        %v125 = vld [vmem:[%s114 + $0x50] sm:$0xff]
        %v126 = vld [vmem:[%s114 + $0x58] sm:$0xff]
        %v127 = vld [vmem:[%s114 + $0x60] sm:$0xff]
        %v128 = vld [vmem:[%s114 + $0x68] sm:$0xff]
        %v129 = vld [vmem:[%s114 + $0x70] sm:$0xff]
        %v130 = vld [vmem:[%s114 + $0x78] sm:$0xff]
        %v131 = vmul.f32 %v115, %v115
        %v132 = vmul.f32 %v116, %v116
        %v133 = vmul.f32 %v117, %v117
        %v134 = vmul.f32 %v118, %v118
        %v135 = vmul.f32 %v119, %v119
        %v136 = vmul.f32 %v120, %v120
        %v137 = vmul.f32 %v121, %v121
        %v138 = vmul.f32 %v122, %v122
        %v139 = vmul.f32 %v123, %v123
        %v140 = vmul.f32 %v124, %v124
        %v141 = vmul.f32 %v125, %v125
        %v142 = vmul.f32 %v126, %v126
        %v143 = vmul.f32 %v127, %v127
        %v144 = vmul.f32 %v128, %v128
        %v145 = vmul.f32 %v129, %v129
        %v146 = vmul.f32 %v130, %v130
        %vm147 = vcmask 261120
        %v148 = vsel %vm147, %v131, 0.0
        %149 = vadd.xlane.f32.xlu0 %v148
        %v150 = vpop.xlane.xlu0 %149
        %v151 = vsel %vm147, %v132, 0.0
        %152 = vadd.xlane.f32.xlu0 %v151
        %v153 = vpop.xlane.xlu0 %152
        %v154 = vsel %vm147, %v133, 0.0
        %155 = vadd.xlane.f32.xlu0 %v154
        %v156 = vpop.xlane.xlu0 %155
        %v157 = vsel %vm147, %v134, 0.0
        %158 = vadd.xlane.f32.xlu0 %v157
        %v159 = vpop.xlane.xlu0 %158
        %v160 = vsel %vm147, %v135, 0.0
        %161 = vadd.xlane.f32.xlu0 %v160
        %v162 = vpop.xlane.xlu0 %161
        %v163 = vsel %vm147, %v136, 0.0
        %164 = vadd.xlane.f32.xlu0 %v163
        %v165 = vpop.xlane.xlu0 %164
        %v166 = vsel %vm147, %v137, 0.0
        %167 = vadd.xlane.f32.xlu0 %v166
        %v168 = vpop.xlane.xlu0 %167
        %v169 = vsel %vm147, %v138, 0.0
        %170 = vadd.xlane.f32.xlu0 %v169
        %v171 = vpop.xlane.xlu0 %170
        %v172 = vsel %vm147, %v139, 0.0
        %173 = vadd.xlane.f32.xlu0 %v172
        %v174 = vpop.xlane.xlu0 %173
        %v175 = vsel %vm147, %v140, 0.0
        %176 = vadd.xlane.f32.xlu0 %v175
        %v177 = vpop.xlane.xlu0 %176
        %v178 = vsel %vm147, %v141, 0.0
        %179 = vadd.xlane.f32.xlu0 %v178
        %v180 = vpop.xlane.xlu0 %179
        %v181 = vsel %vm147, %v142, 0.0
        %182 = vadd.xlane.f32.xlu0 %v181
        %v183 = vpop.xlane.xlu0 %182
        %v184 = vsel %vm147, %v143, 0.0
        %185 = vadd.xlane.f32.xlu0 %v184
        %v186 = vpop.xlane.xlu0 %185
        %v187 = vsel %vm147, %v144, 0.0
        %188 = vadd.xlane.f32.xlu0 %v187
        %v189 = vpop.xlane.xlu0 %188
        %v190 = vsel %vm147, %v145, 0.0
        %191 = vadd.xlane.f32.xlu0 %v190
        %v192 = vpop.xlane.xlu0 %191
        %v193 = vsel %vm147, %v146, 0.0
        %194 = vadd.xlane.f32.xlu0 %v193
        %v195 = vpop.xlane.xlu0 %194
        %v197 = vsel %vm147, %v115, 0
        %v200 = vsel %vm147, %v116, 0
        %v203 = vsel %vm147, %v117, 0
        %v206 = vsel %vm147, %v118, 0
        %v209 = vsel %vm147, %v119, 0
        %v212 = vsel %vm147, %v120, 0
        %v215 = vsel %vm147, %v121, 0
        %v218 = vsel %vm147, %v122, 0
        %v221 = vsel %vm147, %v123, 0
        %v224 = vsel %vm147, %v124, 0
        %v227 = vsel %vm147, %v125, 0
        %v230 = vsel %vm147, %v126, 0
        %v233 = vsel %vm147, %v127, 0
        %v236 = vsel %vm147, %v128, 0
        %v239 = vsel %vm147, %v129, 0
        %v242 = vsel %vm147, %v130, 0
        %244 = vmatprep.subr.mxu0 0.0
        %245 = vmatpush1.xpose.msra.mxu0 %v242
        %246 = vmatprep.subr.mxu0 0.0
        %247 = vmatpush1.xpose.msra.mxu0 %v239
        %248 = vmatprep.subr.mxu0 0.0
        %249 = vmatpush1.xpose.msra.mxu0 %v236
        %250 = vmatprep.subr.mxu0 0.0
        %251 = vmatpush1.xpose.msra.mxu0 %v233
        %252 = vmatprep.subr.mxu0 0.0
        %253 = vmatpush1.xpose.msra.mxu0 %v230
        %254 = vmatprep.subr.mxu0 0.0
        %255 = vmatpush1.xpose.msra.mxu0 %v227
        %256 = vmatprep.subr.mxu0 0.0
        %257 = vmatpush1.xpose.msra.mxu0 %v224
        %258 = vmatprep.subr.mxu0 0.0
        %259 = vmatpush1.xpose.msra.mxu0 %v221
        %260 = vmatprep.subr.mxu0 0.0
        %261 = vmatpush1.xpose.msra.mxu0 %v218
        %262 = vmatprep.subr.mxu0 0.0
        %263 = vmatpush1.xpose.msra.mxu0 %v215
        %264 = vmatprep.subr.mxu0 0.0
        %265 = vmatpush1.xpose.msra.mxu0 %v212
        %266 = vmatprep.subr.mxu0 0.0
        %267 = vmatpush1.xpose.msra.mxu0 %v209
        %268 = vmatprep.subr.mxu0 0.0
        %269 = vmatpush1.xpose.msra.mxu0 %v206
        %270 = vmatprep.subr.mxu0 0.0
        %271 = vmatpush1.xpose.msra.mxu0 %v203
        %272 = vmatprep.subr.mxu0 0.0
        %273 = vmatpush1.xpose.msra.mxu0 %v200
        %274 = vmatprep.subr.mxu0 0.0
        %275 = vmatpush1.xpose.msra.mxu0 %v197
        %276 = vmatprep.subr.mxu0 0.0
        %277 = vmatpush2.xpose.msra.mxu0 0.0
        %278 = vmatprep.subr.mxu0 0.0
        %279 = vmatpush2.xpose.msra.mxu0 0.0
        %280 = vmatprep.subr.mxu0 0.0
        %281 = vmatpush2.xpose.msra.mxu0 0.0
        %282 = vmatprep.subr.mxu0 0.0
        %283 = vmatpush2.xpose.msra.mxu0 0.0
        %284 = vmatprep.subr.mxu0 0.0
        %285 = vmatpush2.xpose.msra.mxu0 0.0
        %286 = vmatprep.subr.mxu0 0.0
        %287 = vmatpush2.xpose.msra.mxu0 0.0
        %288 = vmatprep.subr.mxu0 0.0
        %289 = vmatpush2.xpose.msra.mxu0 0.0
        %290 = vmatprep.subr.mxu0 0.0
        %291 = vmatpush2.xpose.msra.mxu0 0.0
        %292 = vmatprep.subr.mxu0 0.0
        %293 = vmatpush2.xpose.msra.mxu0 0.0
        %294 = vmatprep.subr.mxu0 0.0
        %295 = vmatpush2.xpose.msra.mxu0 0.0
        %296 = vmatprep.subr.mxu0 0.0
        %297 = vmatpush2.xpose.msra.mxu0 0.0
        %298 = vmatprep.subr.mxu0 0.0
        %299 = vmatpush2.xpose.msra.mxu0 0.0
        %300 = vmatprep.subr.mxu0 0.0
        %301 = vmatpush2.xpose.msra.mxu0 0.0
        %302 = vmatprep.subr.mxu0 0.0
        %303 = vmatpush2.xpose.msra.mxu0 0.0
        %304 = vmatprep.subr.mxu0 0.0
        %305 = vmatpush2.xpose.msra.mxu0 0.0
        %306 = vmatprep.subr.mxu0 0.0
        %307 = vmatpush2.xpose.msra.mxu0 0.0
        %308 = vmatprep.mubr.f32.mxu0 0.0
        %309 = vmatmul.mubr.f32.gmra.mxu0 %v197
        %v310 = vpop.f32.mrf.mxu0
        %v311 = vadd.f32 0.0, %v310
        %v312 = vpop.f32.mrf.mxu0
        %313 = vmatprep.mubr.f32.mxu0 0.0
        %314 = vmatmul.mubr.f32.gmra.mxu0 %v200
        %v315 = vpop.f32.mrf.mxu0
        %v316 = vadd.f32 0.0, %v315
        %v317 = vpop.f32.mrf.mxu0
        %318 = vmatprep.mubr.f32.mxu0 0.0
        %319 = vmatmul.mubr.f32.gmra.mxu0 %v203
        %v320 = vpop.f32.mrf.mxu0
        %v321 = vadd.f32 0.0, %v320
        %v322 = vpop.f32.mrf.mxu0
        %323 = vmatprep.mubr.f32.mxu0 0.0
        %324 = vmatmul.mubr.f32.gmra.mxu0 %v206
        %v325 = vpop.f32.mrf.mxu0
        %v326 = vadd.f32 0.0, %v325
        %v327 = vpop.f32.mrf.mxu0
        %328 = vmatprep.mubr.f32.mxu0 0.0
        %329 = vmatmul.mubr.f32.gmra.mxu0 %v209
        %v330 = vpop.f32.mrf.mxu0
        %v331 = vadd.f32 0.0, %v330
        %v332 = vpop.f32.mrf.mxu0
        %333 = vmatprep.mubr.f32.mxu0 0.0
        %334 = vmatmul.mubr.f32.gmra.mxu0 %v212
        %v335 = vpop.f32.mrf.mxu0
        %v336 = vadd.f32 0.0, %v335
        %v337 = vpop.f32.mrf.mxu0
        %338 = vmatprep.mubr.f32.mxu0 0.0
        %339 = vmatmul.mubr.f32.gmra.mxu0 %v215
        %v340 = vpop.f32.mrf.mxu0
        %v341 = vadd.f32 0.0, %v340
        %v342 = vpop.f32.mrf.mxu0
        %343 = vmatprep.mubr.f32.mxu0 0.0
        %344 = vmatmul.mubr.f32.gmra.mxu0 %v218
        %v345 = vpop.f32.mrf.mxu0
        %v346 = vadd.f32 0.0, %v345
        %v347 = vpop.f32.mrf.mxu0
        %348 = vmatprep.mubr.f32.mxu0 0.0
        %349 = vmatmul.mubr.f32.gmra.mxu0 %v221
        %v350 = vpop.f32.mrf.mxu0
        %v351 = vadd.f32 0.0, %v350
        %v352 = vpop.f32.mrf.mxu0
        %353 = vmatprep.mubr.f32.mxu0 0.0
        %354 = vmatmul.mubr.f32.gmra.mxu0 %v224
        %v355 = vpop.f32.mrf.mxu0
        %v356 = vadd.f32 0.0, %v355
        %v357 = vpop.f32.mrf.mxu0
        %358 = vmatprep.mubr.f32.mxu0 0.0
        %359 = vmatmul.mubr.f32.gmra.mxu0 %v227
        %v360 = vpop.f32.mrf.mxu0
        %v361 = vadd.f32 0.0, %v360
        %v362 = vpop.f32.mrf.mxu0
        %363 = vmatprep.mubr.f32.mxu0 0.0
        %364 = vmatmul.mubr.f32.gmra.mxu0 %v230
        %v365 = vpop.f32.mrf.mxu0
        %v366 = vadd.f32 0.0, %v365
        %v367 = vpop.f32.mrf.mxu0
        %368 = vmatprep.mubr.f32.mxu0 0.0
        %369 = vmatmul.mubr.f32.gmra.mxu0 %v233
        %v370 = vpop.f32.mrf.mxu0
        %v371 = vadd.f32 0.0, %v370
        %v372 = vpop.f32.mrf.mxu0
        %373 = vmatprep.mubr.f32.mxu0 0.0
        %374 = vmatmul.mubr.f32.gmra.mxu0 %v236
        %v375 = vpop.f32.mrf.mxu0
        %v376 = vadd.f32 0.0, %v375
        %v377 = vpop.f32.mrf.mxu0
        %378 = vmatprep.mubr.f32.mxu0 0.0
        %379 = vmatmul.mubr.f32.gmra.mxu0 %v239
        %v380 = vpop.f32.mrf.mxu0
        %v381 = vadd.f32 0.0, %v380
        %v382 = vpop.f32.mrf.mxu0
        %383 = vmatprep.mubr.f32.mxu0 0.0
        %384 = vmatmul.mubr.f32.gmra.mxu0 %v242
        %v385 = vpop.f32.mrf.mxu0
        %v386 = vadd.f32 0.0, %v385
        %v387 = vpop.f32.mrf.mxu0
        %388 = vdwg.mxu0
        %v405 = vlaneseq
        %v406 = vand.u32 %v405, 127
        %v407 = vlaneseq
        %v408 = vshrl.u32 %v407, 7
        %v409 = vsub.s32 %v406, %v408
        %v410 = vrot.slane %v150, %v409
        %v411 = vadd.s32 %v406, 4294967288
        %v412 = vlaneseq
        %v413 = vshrl.u32 %v412, 7
        %v414 = vsub.s32 %v411, %v413
        %v415 = vrot.slane %v153, %v414
        %vm416 = vcmask 130112
        %v417 = vsel %vm416, %v415, %v410
        %v418 = vadd.s32 %v406, 4294967280
        %v419 = vlaneseq
        %v420 = vshrl.u32 %v419, 7
        %v421 = vsub.s32 %v418, %v420
        %v422 = vrot.slane %v156, %v421
        %vm423 = vcmask 195712
        %v424 = vsel %vm423, %v422, %v417
        %v425 = vadd.s32 %v406, 4294967272
        %v426 = vlaneseq
        %v427 = vshrl.u32 %v426, 7
        %v428 = vsub.s32 %v425, %v427
        %v429 = vrot.slane %v159, %v428
        %vm430 = vcmask 261312
        %v431 = vsel %vm430, %v429, %v424
        %v432 = vadd.s32 %v406, 4294967264
        %v433 = vlaneseq
        %v434 = vshrl.u32 %v433, 7
        %v435 = vsub.s32 %v432, %v434
        %v436 = vrot.slane %v162, %v435
        %vm437 = vcmask 326912
        %v438 = vsel %vm437, %v436, %v431
        %v439 = vadd.s32 %v406, 4294967256
        %v440 = vlaneseq
        %v441 = vshrl.u32 %v440, 7
        %v442 = vsub.s32 %v439, %v441
        %v443 = vrot.slane %v165, %v442
        %vm444 = vcmask 392512
        %v445 = vsel %vm444, %v443, %v438
        %v446 = vadd.s32 %v406, 4294967248
        %v447 = vlaneseq
        %v448 = vshrl.u32 %v447, 7
        %v449 = vsub.s32 %v446, %v448
        %v450 = vrot.slane %v168, %v449
        %vm451 = vcmask 458112
        %v452 = vsel %vm451, %v450, %v445
        %v453 = vadd.s32 %v406, 4294967240
        %v454 = vlaneseq
        %v455 = vshrl.u32 %v454, 7
        %v456 = vsub.s32 %v453, %v455
        %v457 = vrot.slane %v171, %v456
        %vm458 = vcmask 523712
        %v459 = vsel %vm458, %v457, %v452
        %v460 = vadd.s32 %v406, 4294967232
        %v461 = vlaneseq
        %v462 = vshrl.u32 %v461, 7
        %v463 = vsub.s32 %v460, %v462
        %v464 = vrot.slane %v174, %v463
        %vm465 = vcmask 589312
        %v466 = vsel %vm465, %v464, %v459
        %v467 = vadd.s32 %v406, 4294967224
        %v468 = vlaneseq
        %v469 = vshrl.u32 %v468, 7
        %v470 = vsub.s32 %v467, %v469
        %v471 = vrot.slane %v177, %v470
        %vm472 = vcmask 654912
        %v473 = vsel %vm472, %v471, %v466
        %v474 = vadd.s32 %v406, 4294967216
        %v475 = vlaneseq
        %v476 = vshrl.u32 %v475, 7
        %v477 = vsub.s32 %v474, %v476
        %v478 = vrot.slane %v180, %v477
        %vm479 = vcmask 720512
        %v480 = vsel %vm479, %v478, %v473
        %v481 = vadd.s32 %v406, 4294967208
        %v482 = vlaneseq
        %v483 = vshrl.u32 %v482, 7
        %v484 = vsub.s32 %v481, %v483
        %v485 = vrot.slane %v183, %v484
        %vm486 = vcmask 786112
        %v487 = vsel %vm486, %v485, %v480
        %v488 = vadd.s32 %v406, 4294967200
        %v489 = vlaneseq
        %v490 = vshrl.u32 %v489, 7
        %v491 = vsub.s32 %v488, %v490
        %v492 = vrot.slane %v186, %v491
        %vm493 = vcmask 851712
        %v494 = vsel %vm493, %v492, %v487
        %v495 = vadd.s32 %v406, 4294967192
        %v496 = vlaneseq
        %v497 = vshrl.u32 %v496, 7
        %v498 = vsub.s32 %v495, %v497
        %v499 = vrot.slane %v189, %v498
        %vm500 = vcmask 917312
        %v501 = vsel %vm500, %v499, %v494
        %v502 = vadd.s32 %v406, 4294967184
        %v503 = vlaneseq
        %v504 = vshrl.u32 %v503, 7
        %v505 = vsub.s32 %v502, %v504
        %v506 = vrot.slane %v192, %v505
        %vm507 = vcmask 982912
        %v508 = vsel %vm507, %v506, %v501
        %v509 = vadd.s32 %v406, 4294967176
        %v510 = vlaneseq
        %v511 = vshrl.u32 %v510, 7
        %v512 = vsub.s32 %v509, %v511
        %v513 = vrot.slane %v195, %v512
        %vm514 = vcmask 1048512
        %v515 = vsel %vm514, %v513, %v508
        %vm516 = vcmask 1042434
        %v517 = vsel %vm516, %v515, %v515
        %vm518 = vcmask 1043459
        %v519 = vsel %vm518, %v515, %v517
        %vm520 = vcmask 1044484
        %v521 = vsel %vm520, %v515, %v519
        %vm522 = vcmask 1045509
        %v523 = vsel %vm522, %v515, %v521
        %vm524 = vcmask 1046534
        %v525 = vsel %vm524, %v515, %v523
        %vm526 = vcmask 1047559
        %v527 = vsel %vm526, %v515, %v525
        %v529 = vadd.f32 %v150, %v527
        %v530 = vadd.f32 %v153, %v527
        %v531 = vadd.f32 %v156, %v527
        %v532 = vadd.f32 %v159, %v527
        %v533 = vadd.f32 %v162, %v527
        %v534 = vadd.f32 %v165, %v527
        %v535 = vadd.f32 %v168, %v527
        %v536 = vadd.f32 %v171, %v527
        %v537 = vadd.f32 %v174, %v527
        %v538 = vadd.f32 %v177, %v527
        %v539 = vadd.f32 %v180, %v527
        %v540 = vadd.f32 %v183, %v527
        %v541 = vadd.f32 %v186, %v527
        %v542 = vadd.f32 %v189, %v527
        %v543 = vadd.f32 %v192, %v527
        %v544 = vadd.f32 %v195, %v527
        %v545 = vmul.f32 %v311, 2.0
        %v546 = vmul.f32 %v316, 2.0
        %v547 = vmul.f32 %v321, 2.0
        %v548 = vmul.f32 %v326, 2.0
        %v549 = vmul.f32 %v331, 2.0
        %v550 = vmul.f32 %v336, 2.0
        %v551 = vmul.f32 %v341, 2.0
        %v552 = vmul.f32 %v346, 2.0
        %v553 = vmul.f32 %v351, 2.0
        %v554 = vmul.f32 %v356, 2.0
        %v555 = vmul.f32 %v361, 2.0
        %v556 = vmul.f32 %v366, 2.0
        %v557 = vmul.f32 %v371, 2.0
        %v558 = vmul.f32 %v376, 2.0
        %v559 = vmul.f32 %v381, 2.0
        %v560 = vmul.f32 %v386, 2.0
        %v561 = vsub.f32 %v529, %v545
        %v562 = vsub.f32 %v530, %v546
        %v563 = vsub.f32 %v531, %v547
        %v564 = vsub.f32 %v532, %v548
        %v565 = vsub.f32 %v533, %v549
        %v566 = vsub.f32 %v534, %v550
        %v567 = vsub.f32 %v535, %v551
        %v568 = vsub.f32 %v536, %v552
        %v569 = vsub.f32 %v537, %v553
        %v570 = vsub.f32 %v538, %v554
        %v571 = vsub.f32 %v539, %v555
        %v572 = vsub.f32 %v540, %v556
        %v573 = vsub.f32 %v541, %v557
        %v574 = vsub.f32 %v542, %v558
        %v575 = vsub.f32 %v543, %v559
        %v576 = vsub.f32 %v544, %v560
        %v577 = vmul.f32 %v561, -0.07383343
        %v578 = vmul.f32 %v562, -0.07383343
        %v579 = vmul.f32 %v563, -0.07383343
        %v580 = vmul.f32 %v564, -0.07383343
        %v581 = vmul.f32 %v565, -0.07383343
        %v582 = vmul.f32 %v566, -0.07383343
        %v583 = vmul.f32 %v567, -0.07383343
        %v584 = vmul.f32 %v568, -0.07383343
        %v585 = vmul.f32 %v569, -0.07383343
        %v586 = vmul.f32 %v570, -0.07383343
        %v587 = vmul.f32 %v571, -0.07383343
        %v588 = vmul.f32 %v572, -0.07383343
        %v589 = vmul.f32 %v573, -0.07383343
        %v590 = vmul.f32 %v574, -0.07383343
        %v591 = vmul.f32 %v575, -0.07383343
        %v592 = vmul.f32 %v576, -0.07383343
        %593 = vmax.xlane.f32.xlu0 %v577
        %v594 = vpop.xlane.xlu0 %593
        %595 = vmax.xlane.f32.xlu0 %v578
        %v596 = vpop.xlane.xlu0 %595
        %597 = vmax.xlane.f32.xlu0 %v579
        %v598 = vpop.xlane.xlu0 %597
        %599 = vmax.xlane.f32.xlu0 %v580
        %v600 = vpop.xlane.xlu0 %599
        %601 = vmax.xlane.f32.xlu0 %v581
        %v602 = vpop.xlane.xlu0 %601
        %603 = vmax.xlane.f32.xlu0 %v582
        %v604 = vpop.xlane.xlu0 %603
        %605 = vmax.xlane.f32.xlu0 %v583
        %v606 = vpop.xlane.xlu0 %605
        %607 = vmax.xlane.f32.xlu0 %v584
        %v608 = vpop.xlane.xlu0 %607
        %609 = vmax.xlane.f32.xlu0 %v585
        %v610 = vpop.xlane.xlu0 %609
        %611 = vmax.xlane.f32.xlu0 %v586
        %v612 = vpop.xlane.xlu0 %611
        %613 = vmax.xlane.f32.xlu0 %v587
        %v614 = vpop.xlane.xlu0 %613
        %615 = vmax.xlane.f32.xlu0 %v588
        %v616 = vpop.xlane.xlu0 %615
        %617 = vmax.xlane.f32.xlu0 %v589
        %v618 = vpop.xlane.xlu0 %617
        %619 = vmax.xlane.f32.xlu0 %v590
        %v620 = vpop.xlane.xlu0 %619
        %621 = vmax.xlane.f32.xlu0 %v591
        %v622 = vpop.xlane.xlu0 %621
        %623 = vmax.xlane.f32.xlu0 %v592
        %v624 = vpop.xlane.xlu0 %623
        %v625 = vsub.f32 %v577, %v594
        %v626 = vsub.f32 %v578, %v596
        %v627 = vsub.f32 %v579, %v598
        %v628 = vsub.f32 %v580, %v600
        %v629 = vsub.f32 %v581, %v602
        %v630 = vsub.f32 %v582, %v604
        %v631 = vsub.f32 %v583, %v606
        %v632 = vsub.f32 %v584, %v608
        %v633 = vsub.f32 %v585, %v610
        %v634 = vsub.f32 %v586, %v612
        %v635 = vsub.f32 %v587, %v614
        %v636 = vsub.f32 %v588, %v616
        %v637 = vsub.f32 %v589, %v618
        %v638 = vsub.f32 %v590, %v620
        %v639 = vsub.f32 %v591, %v622
        %v640 = vsub.f32 %v592, %v624
        %v641 = vmul.f32 %v625, 1.442695
        %v642 = vpow.pop %v641
        %v643 = vmul.f32 %v626, 1.442695
        %v644 = vpow.pop %v643
        %v645 = vmul.f32 %v627, 1.442695
        %v646 = vpow.pop %v645
        %v647 = vmul.f32 %v628, 1.442695
        %v648 = vpow.pop %v647
        %v649 = vmul.f32 %v629, 1.442695
        %v650 = vpow.pop %v649
        %v651 = vmul.f32 %v630, 1.442695
        %v652 = vpow.pop %v651
        %v653 = vmul.f32 %v631, 1.442695
        %v654 = vpow.pop %v653
        %v655 = vmul.f32 %v632, 1.442695
        %v656 = vpow.pop %v655
        %v657 = vmul.f32 %v633, 1.442695
        %v658 = vpow.pop %v657
        %v659 = vmul.f32 %v634, 1.442695
        %v660 = vpow.pop %v659
        %v661 = vmul.f32 %v635, 1.442695
        %v662 = vpow.pop %v661
        %v663 = vmul.f32 %v636, 1.442695
        %v664 = vpow.pop %v663
        %v665 = vmul.f32 %v637, 1.442695
        %v666 = vpow.pop %v665
        %v667 = vmul.f32 %v638, 1.442695
        %v668 = vpow.pop %v667
        %v669 = vmul.f32 %v639, 1.442695
        %v670 = vpow.pop %v669
        %v671 = vmul.f32 %v640, 1.442695
        %v672 = vpow.pop %v671
        %673 = vadd.xlane.f32.xlu0 %v642
        %v674 = vpop.xlane.xlu0 %673
        %675 = vadd.xlane.f32.xlu0 %v644
        %v676 = vpop.xlane.xlu0 %675
        %677 = vadd.xlane.f32.xlu0 %v646
        %v678 = vpop.xlane.xlu0 %677
        %679 = vadd.xlane.f32.xlu0 %v648
        %v680 = vpop.xlane.xlu0 %679
        %681 = vadd.xlane.f32.xlu0 %v650
        %v682 = vpop.xlane.xlu0 %681
        %683 = vadd.xlane.f32.xlu0 %v652
        %v684 = vpop.xlane.xlu0 %683
        %685 = vadd.xlane.f32.xlu0 %v654
        %v686 = vpop.xlane.xlu0 %685
        %687 = vadd.xlane.f32.xlu0 %v656
        %v688 = vpop.xlane.xlu0 %687
        %689 = vadd.xlane.f32.xlu0 %v658
        %v690 = vpop.xlane.xlu0 %689
        %691 = vadd.xlane.f32.xlu0 %v660
        %v692 = vpop.xlane.xlu0 %691
        %693 = vadd.xlane.f32.xlu0 %v662
        %v694 = vpop.xlane.xlu0 %693
        %695 = vadd.xlane.f32.xlu0 %v664
        %v696 = vpop.xlane.xlu0 %695
        %697 = vadd.xlane.f32.xlu0 %v666
        %v698 = vpop.xlane.xlu0 %697
        %699 = vadd.xlane.f32.xlu0 %v668
        %v700 = vpop.xlane.xlu0 %699
        %701 = vadd.xlane.f32.xlu0 %v670
        %v702 = vpop.xlane.xlu0 %701
        %703 = vadd.xlane.f32.xlu0 %v672
        %v704 = vpop.xlane.xlu0 %703
        %v705 = vrcp.pop %v674
        %v706 = vmul.f32 %v642, %v705
        %v707 = vrcp.pop %v676
        %v708 = vmul.f32 %v644, %v707
        %v709 = vrcp.pop %v678
        %v710 = vmul.f32 %v646, %v709
        %v711 = vrcp.pop %v680
        %v712 = vmul.f32 %v648, %v711
        %v713 = vrcp.pop %v682
        %v714 = vmul.f32 %v650, %v713
        %v715 = vrcp.pop %v684
        %v716 = vmul.f32 %v652, %v715
        %v717 = vrcp.pop %v686
        %v718 = vmul.f32 %v654, %v717
        %v719 = vrcp.pop %v688
        %v720 = vmul.f32 %v656, %v719
        %v721 = vrcp.pop %v690
        %v722 = vmul.f32 %v658, %v721
        %v723 = vrcp.pop %v692
        %v724 = vmul.f32 %v660, %v723
        %v725 = vrcp.pop %v694
        %v726 = vmul.f32 %v662, %v725
        %v727 = vrcp.pop %v696
        %v728 = vmul.f32 %v664, %v727
        %v729 = vrcp.pop %v698
        %v730 = vmul.f32 %v666, %v729
        %v731 = vrcp.pop %v700
        %v732 = vmul.f32 %v668, %v731
        %v733 = vrcp.pop %v702
        %v734 = vmul.f32 %v670, %v733
        %v735 = vrcp.pop %v704
        %v736 = vmul.f32 %v672, %v735
        %737 = vst [vmem:[%s109] sm:$0xff] %v706
        %738 = vst [vmem:[%s109 + $0x8] sm:$0xff] %v708
        %739 = vst [vmem:[%s109 + $0x10] sm:$0xff] %v710
        %740 = vst [vmem:[%s109 + $0x18] sm:$0xff] %v712
        %741 = vst [vmem:[%s109 + $0x20] sm:$0xff] %v714
        %742 = vst [vmem:[%s109 + $0x28] sm:$0xff] %v716
        %743 = vst [vmem:[%s109 + $0x30] sm:$0xff] %v718
        %744 = vst [vmem:[%s109 + $0x38] sm:$0xff] %v720
        %745 = vst [vmem:[%s109 + $0x40] sm:$0xff] %v722
        %746 = vst [vmem:[%s109 + $0x48] sm:$0xff] %v724
        %747 = vst [vmem:[%s109 + $0x50] sm:$0xff] %v726
        %748 = vst [vmem:[%s109 + $0x58] sm:$0xff] %v728
        %749 = vst [vmem:[%s109 + $0x60] sm:$0xff] %v730
        %750 = vst [vmem:[%s109 + $0x68] sm:$0xff] %v732
        %751 = vst [vmem:[%s109 + $0x70] sm:$0xff] %v734
        %752 = vst [vmem:[%s109 + $0x78] sm:$0xff] %v736
        %s753 = sand.u32 %s49, 1
        %s754 = scalar_lea.sflag [#allocation3], %s753
        %s755 = sand.u32 %s49, 1
        %s756 = smul.addr %s755, 128
        %s757 = scalar_lea.vmem [#allocation2], %s756
        // Predicated region
        $region25: #{tpu_custom_call.1} parent=23 // pred_check
          %p758 = pneg %p59
        $region26: #{tpu_custom_call.1} parent=23 // pred_check_branch
          %760 = sbr.rel (%p758) target = $region28
        $region27: #{tpu_custom_call.1} parent=23 // pred_region
          %s762 = ssub.s32 2048, 2048
          %763 = vsyncadd %s754, %s762
          %s764 = smul.addr %s15, 16
          %s765 = smul.addr %s764, 128
          %s766 = scalar_lea.hbm %s1, %s765
          %s767 = sshll.u32 %s757, 4
          %s768 = int_to_ptr.vmem [resolvable:$true] %s767
          %773 = dma.vmem_to_hbm [thread:$0]  %s768, 2048, %s766, %s754, 128, 128, 8
        $region28: #{tpu_custom_call.1} parent=23 // pred_fallthru
          _
      $region24: #{tpu_custom_call.1} parent=5 // pred_fallthru
        _
      %p774 = scmp.le.s32.totalorder 2, %s10
      // Predicated region
      $region29: #{tpu_custom_call.1} parent=5 // pred_check
        %p775 = pneg %p774
      $region30: #{tpu_custom_call.1} parent=5 // pred_check_branch
        %777 = sbr.rel (%p775) target = $region32
      $region31: #{tpu_custom_call.1} parent=5 // pred_region
        %s778 = ssub.s32 %s10, 2
        // Predicated region
        $region33: #{tpu_custom_call.1} parent=31 // pred_check
          %p779 = pneg %p65
        $region34: #{tpu_custom_call.1} parent=31 // pred_check_branch
          %781 = sbr.rel (%p779) target = $region36
        $region35: #{tpu_custom_call.1} parent=31 // pred_region
          %s782 = sand.u32 %s50, 1
          %s783 = scalar_lea.sflag [#allocation3], %s782
          %s784 = sand.u32 %s50, 1
          %s785 = smul.addr %s784, 128
          %s786 = scalar_lea.vmem [#allocation2], %s785
          %787 = dma.done %s783, 2048
        $region36: #{tpu_custom_call.1} parent=31 // pred_fallthru
          _
      $region32: #{tpu_custom_call.1} parent=5 // pred_fallthru
        _
    $region6: #{tpu_custom_call.1} parent=1 // loop_footer
      %s14 = sadd.s32 1, %s10
    $region7: #{tpu_custom_call.1} parent=1 // loop_footer_branch
      %9 = sbr.rel target = $region3
    $region8: #{tpu_custom_call.1} parent=1 // loop_exit
      _
    %788 = vsyncpa [#allocation3], 1
    %s789 = scalar_lea.sflag [#allocation3], 1
    %790 = vsyncpa %s789, 1

</llo_original>
